<compile_context>
chip_gen: v7x
topology: tpu7x:2x2x1
jax: 0.10.0
libtpu: 0.0.40
codegen_flags: <defaults>
</compile_context>

<pallas_src>
import functools

import jax
import jax.numpy as jnp
from jax.experimental import pallas as pl
from jax.experimental.pallas import tpu as pltpu


def _round_up(x, m):
    return ((x + m - 1) // m) * m


# ---------------------------------------------------------------------------
# Kernel
# ---------------------------------------------------------------------------
def _swiglu_kernel(x_ref, w_ref, b_ref, o_ref, acc_ref):
    # x_ref:   (tm, tk)        token tile, native dtype
    # w_ref:   (tk, 2*tn)      packed [gate_tile | proj_tile] weight slab
    # b_ref:   (1, 2*tn)       packed [gate_bias | proj_bias] tile
    # o_ref:   (tm, tn)        output tile
    # acc_ref: (tm, 2*tn) f32  fused accumulator, persistent across K axis
    k = pl.program_id(2)

    partial = jnp.dot(x_ref[...], w_ref[...], preferred_element_type=jnp.float32)

    @pl.when(k == 0)
    def _():
        acc_ref[...] = partial          # direct write: no zero-fill pass

    @pl.when(k > 0)
    def _():
        acc_ref[...] += partial

    @pl.when(k == pl.num_programs(2) - 1)
    def _():
        tn = o_ref.shape[-1]
        acc = acc_ref[...] + b_ref[...].astype(jnp.float32)   # bias added once
        gate = acc[:, :tn]               # lane-aligned static slices (tn % 128 == 0)
        proj = acc[:, tn:]
        o_ref[...] = (gate * jax.nn.sigmoid(gate) * proj).astype(o_ref.dtype)


# ---------------------------------------------------------------------------
# Hardware-aware configuration (runs once, at parameter-init time)
# ---------------------------------------------------------------------------
def _hw_info():
    vmem_cap = 64 * 2**20          # conservative fallback (v7x per-TC VMEM)
    try:
        vmem_cap = int(pltpu.get_tpu_info().vmem_capacity_bytes)
    except Exception:
        pass
    num_cores = 1
    try:
        num_cores = max(1, int(getattr(jax.devices()[0], "num_cores", 1)))
    except Exception:
        pass
    return vmem_cap, num_cores


def _vmem_need(tm, tn, tk, itemsize):
    # Double-buffered BlockSpec tiles + f32 accumulator scratch.
    return (2 * tm * tk * itemsize            # x tiles
            + 2 * tk * (2 * tn) * itemsize    # packed weight tiles
            + 2 * 1 * (2 * tn) * itemsize     # packed bias tiles
            + 2 * tm * tn * itemsize          # output tiles
            + tm * (2 * tn) * 4)              # f32 accumulator


def swiglu_init(wg, bg, wp, bp, *, tn=None, tk=None):
    """Pack SwiGLU parameters once and pick generation-aware tile sizes.

    wg/wp: (H, H) in (in, out) layout. bg/bp: (H,).
    Returns ((w_packed, b_packed), cfg) where cfg holds static tiling info.
    """
    H = wg.shape[0]
    assert wg.shape == (H, H) and wp.shape == (H, H)
    Hp = _round_up(H, 128)
    itemsize = jnp.dtype(wg.dtype).itemsize

    vmem_cap, num_cores = _hw_info()
    # Gen-aware VMEM budget: headroom below physical capacity, cap at ~100 MiB.
    vmem_limit = int(min(max(vmem_cap - (8 << 20), 16 << 20), 100 << 20))
    budget = int(vmem_limit * 0.85)

    # Candidate tile widths: multiples of 128 that divide Hp.
    cands = [v for v in range(128, Hp + 1, 128) if Hp % v == 0]

    tm_max = 1024
    if tn is None:
        tn_cap = 1024
        if num_cores > 1 and any(v <= Hp // 2 for v in cands):
            # Keep >=2 n-blocks so both TensorCores get work even when the
            # token axis has a single tile (decode regime).
            tn_cap = min(tn_cap, Hp // 2)
        tn = max(v for v in cands if v <= tn_cap)
    if tk is None:
        tk = 128
        for v in sorted(cands, reverse=True):   # biggest tk that fits VMEM
            if _vmem_need(tm_max, tn, v, itemsize) <= budget:
                tk = v
                break

    assert tn % 128 == 0 and Hp % tn == 0
    assert tk % 128 == 0 and Hp % tk == 0

    # ---- pack parameters once (NOT per forward call) ----
    wg_p = jnp.pad(wg, ((0, Hp - H), (0, Hp - H)))
    wp_p = jnp.pad(wp, ((0, Hp - H), (0, Hp - H)))
    bg_p = jnp.pad(bg, (0, Hp - H))
    bp_p = jnp.pad(bp, (0, Hp - H))
    nt = Hp // tn
    # Column tile n of the packed weight = [gate_tile_n | proj_tile_n].
    w_packed = jnp.stack(
        [wg_p.reshape(Hp, nt, tn), wp_p.reshape(Hp, nt, tn)], axis=2
    ).reshape(Hp, 2 * Hp)
    b_packed = jnp.stack(
        [bg_p.reshape(nt, tn), bp_p.reshape(nt, tn)], axis=1
    ).reshape(1, 2 * Hp)

    cfg = dict(H=H, Hp=Hp, tn=tn, tk=tk, tm_max=tm_max, vmem_limit=vmem_limit)
    return (w_packed, b_packed), cfg


# ---------------------------------------------------------------------------
# Forward pass
# ---------------------------------------------------------------------------
@functools.partial(jax.jit, static_argnames=("tm", "tn", "tk", "vmem_limit"))
def _swiglu_padded(x_p, w_packed, b_packed, *, tm, tn, tk, vmem_limit):
    Mp, Hp = x_p.shape
    grid = (Mp // tm, Hp // tn, Hp // tk)
    return pl.pallas_call(
        _swiglu_kernel,
        out_shape=jax.ShapeDtypeStruct((Mp, Hp), x_p.dtype),
        grid_spec=pltpu.PrefetchScalarGridSpec(
            num_scalar_prefetch=0,
            grid=grid,
            in_specs=[
                pl.BlockSpec((tm, tk), lambda m, n, k: (m, k)),          # x
                pl.BlockSpec((tk, 2 * tn), lambda m, n, k: (k, n)),      # [Wg|Wp] packed
                pl.BlockSpec((1, 2 * tn), lambda m, n, k: (0, n)),       # [bg|bp] packed
            ],
            out_specs=pl.BlockSpec((tm, tn), lambda m, n, k: (m, n)),
            scratch_shapes=[pltpu.VMEM((tm, 2 * tn), jnp.float32)],      # fused acc
        ),
        compiler_params=pltpu.CompilerParams(
            dimension_semantics=("parallel", "parallel", "arbitrary"),
            vmem_limit_bytes=vmem_limit,
        ),
    )(x_p, w_packed, b_packed)


def swiglu_apply(params, cfg, x, *, tm=None):
    """SwiGLU(x) = SiLU(x @ Wg + bg) * (x @ Wp + bp).  x: (..., H)."""
    w_packed, b_packed = params
    H, Hp, tn, tk = cfg["H"], cfg["Hp"], cfg["tn"], cfg["tk"]

    orig_shape = x.shape
    x2 = x.reshape(-1, H)
    M = x2.shape[0]

    if tm is None:
        # Ladder: fewest weight passes first, then least row padding.
        ladder = [v for v in (1024, 512, 256, 128, 64, 32, 16) if v <= cfg["tm_max"]]
        tm = min(ladder, key=lambda v: (-(-M // v), _round_up(M, v)))
    Mp = _round_up(M, tm)

    pad_m, pad_h = Mp - M, Hp - H
    x_p = jnp.pad(x2, ((0, pad_m), (0, pad_h))) if (pad_m or pad_h) else x2

    out = _swiglu_padded(x_p, w_packed, b_packed,
                         tm=tm, tn=tn, tk=tk, vmem_limit=cfg["vmem_limit"])
    return out[:M, :H].reshape(orig_shape)


def _reference(x, wg, bg, wp, bp):
    gate = x.astype(jnp.float32) @ wg.astype(jnp.float32) + bg
    proj = x.astype(jnp.float32) @ wp.astype(jnp.float32) + bp
    return (jax.nn.silu(gate) * proj).astype(x.dtype)


if __name__ == "__main__":
    # --- Test 1: shapes consistent with the module (batch=2, seq=8, hidden=32) ---
    B, S, H = 2, 8, 32
    key = jax.random.PRNGKey(0)
    kx, kwg, kbg, kwp, kbp = jax.random.split(key, 5)

    x = jax.random.normal(kx, (B, S, H), dtype=jnp.float32)

    # nn.Linear-style uniform(-1/sqrt(H), 1/sqrt(H)) init; weights stored (out, in),
    # transposed to the (in, out) layout the kernel expects.
    bound = 1.0 / jnp.sqrt(jnp.float32(H))
    wg = jax.random.uniform(kwg, (H, H), jnp.float32, -bound, bound).T
    bg = jax.random.uniform(kbg, (H,), jnp.float32, -bound, bound)
    wp = jax.random.uniform(kwp, (H, H), jnp.float32, -bound, bound).T
    bp = jax.random.uniform(kbp, (H,), jnp.float32, -bound, bound)

    params, cfg = swiglu_init(wg, bg, wp, bp)       # one-time parameter packing
    out = jax.block_until_ready(swiglu_apply(params, cfg, x))

    ref = _reference(x.reshape(-1, H), wg, bg, wp, bp).reshape(B, S, H)
    assert out.shape == (B, S, H)
    assert jnp.allclose(out, ref, atol=1e-5, rtol=1e-5), "mismatch vs reference (test 1)"

    # --- Test 2: force >1 block on every grid axis (m, n, k) to exercise the
    # packed layout, K accumulation and tm ladder paths. ---
    H2, M2 = 256, 40
    k2 = jax.random.split(jax.random.PRNGKey(1), 5)
    x2 = jax.random.normal(k2[0], (M2, H2), dtype=jnp.float32)
    b2 = 1.0 / jnp.sqrt(jnp.float32(H2))
    wg2 = jax.random.uniform(k2[1], (H2, H2), jnp.float32, -b2, b2).T
    bg2 = jax.random.uniform(k2[2], (H2,), jnp.float32, -b2, b2)
    wp2 = jax.random.uniform(k2[3], (H2, H2), jnp.float32, -b2, b2).T
    bp2 = jax.random.uniform(k2[4], (H2,), jnp.float32, -b2, b2)

    params2, cfg2 = swiglu_init(wg2, bg2, wp2, bp2, tn=128, tk=128)
    out2 = jax.block_until_ready(swiglu_apply(params2, cfg2, x2, tm=16))  # grid (3,2,2)
    ref2 = _reference(x2, wg2, bg2, wp2, bp2)
    assert jnp.allclose(out2, ref2, atol=1e-4, rtol=1e-4), "mismatch vs reference (test 2)"

    print("KERNEL_OK")
</pallas_src>

<mosaic_0001>
module attributes {stable_mosaic.version = 11 : i64} {
  func.func @_swiglu_kernel(%arg0: i32, %arg1: i32, %arg2: i32, %arg3: memref<16x128xf32, #tpu.memory_space<vmem>>, %arg4: memref<128x256xf32, #tpu.memory_space<vmem>>, %arg5: memref<1x256xf32, #tpu.memory_space<vmem>>, %arg6: memref<16x128xf32, #tpu.memory_space<vmem>>, %arg7: memref<16x256xf32, #tpu.memory_space<vmem>>) attributes {dimension_semantics = [#tpu.dimension_semantics<parallel>, #tpu.dimension_semantics<parallel>, #tpu.dimension_semantics<arbitrary>], iteration_bounds = array<i64: 1, 1, 1>, scalar_prefetch = 0 : i64, scratch_operands = 1 : i64, tpu.core_type = #tpu.core_type<tc>, window_params = [{transform_indices = @transform_0, window_bounds = array<i64: 16, 128>}, {transform_indices = @transform_1, window_bounds = array<i64: 128, 256>}, {transform_indices = @transform_2, window_bounds = array<i64: 1, 256>}, {transform_indices = @transform_3, window_bounds = array<i64: 16, 128>}]} {
    %c0 = arith.constant 0 : index
    %c0_0 = arith.constant 0 : index
    %0 = vector.load %arg3[%c0, %c0_0] : memref<16x128xf32, #tpu.memory_space<vmem>>, vector<16x128xf32>
    %c0_1 = arith.constant 0 : index
    %c0_2 = arith.constant 0 : index
    %1 = vector.load %arg4[%c0_1, %c0_2] : memref<128x256xf32, #tpu.memory_space<vmem>>, vector<128x256xf32>
    %cst = arith.constant dense<0.000000e+00> : vector<16x256xf32>
    %2 = tpu.matmul %0, %1, %cst {dimension_numbers = #tpu.dot_dimension_numbers<[1], [0], [0], [1], [0, 0, 1, 1], [], []>} : vector<16x128xf32>, vector<128x256xf32>, vector<16x256xf32> -> vector<16x256xf32>
    %c0_i32 = arith.constant 0 : i32
    %3 = arith.cmpi eq, %arg2, %c0_i32 : i32
    %4 = arith.extui %3 : i1 to i32
    %c0_i32_3 = arith.constant 0 : i32
    %5 = arith.cmpi ne, %4, %c0_i32_3 : i32
    scf.if %5 {
      %c0_8 = arith.constant 0 : index
      %c0_9 = arith.constant 0 : index
      %12 = vector.load %arg7[%c0_8, %c0_9] : memref<16x256xf32, #tpu.memory_space<vmem>>, vector<16x256xf32>
      tpu.vector_store %arg7[%c0_8, %c0_9], %2 {strides = array<i32>} : memref<16x256xf32, #tpu.memory_space<vmem>>, vector<16x256xf32>,
    } else {
    }
    %c0_i32_4 = arith.constant 0 : i32
    %6 = arith.cmpi sgt, %arg2, %c0_i32_4 : i32
    %7 = arith.extui %6 : i1 to i32
    %c0_i32_5 = arith.constant 0 : i32
    %8 = arith.cmpi ne, %7, %c0_i32_5 : i32
    scf.if %8 {
      %c0_8 = arith.constant 0 : index
      %c0_9 = arith.constant 0 : index
      %12 = vector.load %arg7[%c0_8, %c0_9] : memref<16x256xf32, #tpu.memory_space<vmem>>, vector<16x256xf32>
      %13 = arith.addf %12, %2 : vector<16x256xf32>
      %c0_10 = arith.constant 0 : index
      %c0_11 = arith.constant 0 : index
      %14 = vector.load %arg7[%c0_10, %c0_11] : memref<16x256xf32, #tpu.memory_space<vmem>>, vector<16x256xf32>
      tpu.vector_store %arg7[%c0_10, %c0_11], %13 {strides = array<i32>} : memref<16x256xf32, #tpu.memory_space<vmem>>, vector<16x256xf32>,
    } else {
    }
    %c0_i32_6 = arith.constant 0 : i32
    %9 = arith.cmpi eq, %arg2, %c0_i32_6 : i32
    %10 = arith.extui %9 : i1 to i32
    %c0_i32_7 = arith.constant 0 : i32
    %11 = arith.cmpi ne, %10, %c0_i32_7 : i32
    scf.if %11 {
      %c0_8 = arith.constant 0 : index
      %c0_9 = arith.constant 0 : index
      %12 = vector.load %arg7[%c0_8, %c0_9] : memref<16x256xf32, #tpu.memory_space<vmem>>, vector<16x256xf32>
      %c0_10 = arith.constant 0 : index
      %c0_11 = arith.constant 0 : index
      %13 = vector.load %arg5[%c0_10, %c0_11] : memref<1x256xf32, #tpu.memory_space<vmem>>, vector<1x256xf32>
      %14 = vector.broadcast %13 : vector<1x256xf32> to vector<16x256xf32>
      %15 = arith.addf %12, %14 : vector<16x256xf32>
      %16 = vector.extract_strided_slice %15 {offsets = [0, 0], sizes = [16, 128], strides = [1, 1]} : vector<16x256xf32> to vector<16x128xf32>
      %17 = vector.extract_strided_slice %15 {offsets = [0, 128], sizes = [16, 128], strides = [1, 1]} : vector<16x256xf32> to vector<16x128xf32>
      %18 = arith.negf %16 : vector<16x128xf32>
      %19 = math.exp %18 : vector<16x128xf32>
      %cst_12 = arith.constant 1.000000e+00 : f32
      %20 = vector.broadcast %cst_12 : f32 to vector<16x128xf32>
      %21 = arith.addf %20, %19 : vector<16x128xf32>
      %22 = arith.divf %20, %21 : vector<16x128xf32>
      %23 = arith.mulf %16, %22 : vector<16x128xf32>
      %24 = arith.mulf %23, %17 : vector<16x128xf32>
      %c0_13 = arith.constant 0 : index
      %c0_14 = arith.constant 0 : index
      %25 = vector.load %arg6[%c0_13, %c0_14] : memref<16x128xf32, #tpu.memory_space<vmem>>, vector<16x128xf32>
      tpu.vector_store %arg6[%c0_13, %c0_14], %24 {strides = array<i32>} : memref<16x128xf32, #tpu.memory_space<vmem>>, vector<16x128xf32>,
    } else {
    }
    return
  }
  func.func @transform_0(%arg0: i32, %arg1: i32, %arg2: i32) -> (i32, i32) {
    %c0_i32 = arith.constant 0 : i32
    return %arg0, %arg2 : i32, i32
  }
  func.func @transform_1(%arg0: i32, %arg1: i32, %arg2: i32) -> (i32, i32) {
    %c0_i32 = arith.constant 0 : i32
    return %arg2, %arg1 : i32, i32
  }
  func.func @transform_2(%arg0: i32, %arg1: i32, %arg2: i32) -> (i32, i32) {
    %c0_i32 = arith.constant 0 : i32
    %c0_i32_0 = arith.constant 0 : i32
    return %c0_i32, %arg1 : i32, i32
  }
  func.func @transform_3(%arg0: i32, %arg1: i32, %arg2: i32) -> (i32, i32) {
    %c0_i32 = arith.constant 0 : i32
    return %arg0, %arg1 : i32, i32
  }
}

</mosaic_0001>

<llo_original>
// kernel: _swiglu_padded.1
$region0: #{_swiglu_padded.1}
  #allocation0 [shape = 'u32[]', space=smem, size = 0x4, offset = 0x4, fixed_abs, tag = 'smem constant byte address 0x4 - core index']
  #allocation1 [shape = 'u32[144,128]{1,0:T(1,128)}', space=vmem, size = 0x12000, scoped, tag = 'internal scratch']
  #allocation2 [shape = 'f32[16,256]{1,0:T(8,128)}', space=vmem, size = 0x4000, scoped, tag = 'scratch operand']
  %s0 = inlined_call_operand.hbm [shape: f32[16,128], index: 0, kind: input, shape index: {}]
  %s1 = inlined_call_operand.hbm [shape: f32[128,256], index: 1, kind: input, shape index: {}]
  %s2 = inlined_call_operand.vmem [shape: f32[1,256], index: 2, kind: input, shape index: {}]
  %s3 = inlined_call_operand.hbm [shape: f32[16,128], index: 3, kind: output, shape index: {}]
  %s4 = sld [smem:[#allocation0]]
  $region42: #{_swiglu_padded.1} parent=0
    _
  %s6 = ssub.s32 1, %s4
  %s7 = scalar_select 0, %s6, %s4
  $region1: #{_swiglu_padded.1} parent=0
    #allocation3 [shape = 'u8[8192]{0}', space=vmem, size = 0x2000, scoped, tag = 'input window, operand 0, single buffered']
    #allocation4 [shape = 's32[1]{0}', space=sflag, size = 0x4, scoped, tag = 'scoped memory for _swiglu_padded.1']
    #allocation5 [shape = 's32[1]{0}', space=sflag, size = 0x4, scoped, tag = 'scoped memory for _swiglu_padded.1']
    #allocation6 [shape = 'u8[131072]{0}', space=vmem, size = 0x20000, scoped, tag = 'input window, operand 1, single buffered']
    #allocation7 [shape = 's32[1]{0}', space=sflag, size = 0x4, scoped, tag = 'scoped memory for _swiglu_padded.1']
    #allocation8 [shape = 'u8[8192]{0}', space=vmem, size = 0x2000, scoped, tag = 'output window, operand 0, single buffered']
    %8 = vsyncpa [#allocation4], 0
    %9 = vsyncpa [#allocation7], 0
    %10 = vsyncpa [#allocation5], 0
    // Predicated region
    $region2: #{_swiglu_padded.1} parent=1 // pred_check
      _
    $region3: #{_swiglu_padded.1} parent=1 // pred_check_branch
      %12 = sbr.rel (0) target = $region5
    $region4: #{_swiglu_padded.1} parent=1 // pred_region
      %s14 = ssub.s32 256, 256
      %15 = vsyncadd [#allocation4], %s14
      %s16 = sshll.u32 [#allocation3], 4
      %s17 = int_to_ptr.vmem [resolvable:$true] %s16
      %22 = dma.hbm_to_vmem [thread:$0]  %s0, 256, %s17, [#allocation4], 128, 128, 8
    $region5: #{_swiglu_padded.1} parent=1 // pred_fallthru
      _
    // Predicated region
    $region6: #{_swiglu_padded.1} parent=1 // pred_check
      _
    $region7: #{_swiglu_padded.1} parent=1 // pred_check_branch
      %24 = sbr.rel (0) target = $region9
    $region8: #{_swiglu_padded.1} parent=1 // pred_region
      %s26 = ssub.s32 4096, 4096
      %27 = vsyncadd [#allocation7], %s26
      %s28 = sshll.u32 [#allocation6], 4
      %s29 = int_to_ptr.vmem [resolvable:$true] %s28
      %34 = dma.hbm_to_vmem [thread:$0]  %s1, 4096, %s29, [#allocation7], 256, 256, 16
    $region9: #{_swiglu_padded.1} parent=1 // pred_fallthru
      _
    // Predicated region
    $region10: #{_swiglu_padded.1} parent=1 // pred_check
      _
    $region11: #{_swiglu_padded.1} parent=1 // pred_check_branch
      %36 = sbr.rel (0) target = $region13
    $region12: #{_swiglu_padded.1} parent=1 // pred_region
      _
    $region13: #{_swiglu_padded.1} parent=1 // pred_fallthru
      _
    // Predicated region
    $region14: #{_swiglu_padded.1} parent=1 // pred_check
      _
    $region15: #{_swiglu_padded.1} parent=1 // pred_check_branch
      %38 = sbr.rel (0) target = $region17
    $region16: #{_swiglu_padded.1} parent=1 // pred_region
      %39 = dma.done [#allocation4], 256
    $region17: #{_swiglu_padded.1} parent=1 // pred_fallthru
      _
    // Predicated region
    $region18: #{_swiglu_padded.1} parent=1 // pred_check
      _
    $region19: #{_swiglu_padded.1} parent=1 // pred_check_branch
      %41 = sbr.rel (0) target = $region21
    $region20: #{_swiglu_padded.1} parent=1 // pred_region
      %42 = dma.done [#allocation7], 4096
    $region21: #{_swiglu_padded.1} parent=1 // pred_fallthru
      _
    %v43 = vld [vmem:[#allocation3] sm:$0xff]
    %v44 = vld [vmem:[#allocation3 + $0x8] sm:$0xff]
    %v45 = vld [vmem:[#allocation6] sm:$0xff]
    %v46 = vld [vmem:[#allocation6 + $0x8] sm:$0xff]
    %v47 = vld [vmem:[#allocation6 + $0x10] sm:$0xff]
    %v48 = vld [vmem:[#allocation6 + $0x18] sm:$0xff]
    %v49 = vld [vmem:[#allocation6 + $0x20] sm:$0xff]
    %v50 = vld [vmem:[#allocation6 + $0x28] sm:$0xff]
    %v51 = vld [vmem:[#allocation6 + $0x30] sm:$0xff]
    %v52 = vld [vmem:[#allocation6 + $0x38] sm:$0xff]
    %v53 = vld [vmem:[#allocation6 + $0x40] sm:$0xff]
    %v54 = vld [vmem:[#allocation6 + $0x48] sm:$0xff]
    %v55 = vld [vmem:[#allocation6 + $0x50] sm:$0xff]
    %v56 = vld [vmem:[#allocation6 + $0x58] sm:$0xff]
    %v57 = vld [vmem:[#allocation6 + $0x60] sm:$0xff]
    %v58 = vld [vmem:[#allocation6 + $0x68] sm:$0xff]
    %v59 = vld [vmem:[#allocation6 + $0x70] sm:$0xff]
    %v60 = vld [vmem:[#allocation6 + $0x78] sm:$0xff]
    %v61 = vld [vmem:[#allocation6 + $0x80] sm:$0xff]
    %v62 = vld [vmem:[#allocation6 + $0x88] sm:$0xff]
    %v63 = vld [vmem:[#allocation6 + $0x90] sm:$0xff]
    %v64 = vld [vmem:[#allocation6 + $0x98] sm:$0xff]
    %v65 = vld [vmem:[#allocation6 + $0xa0] sm:$0xff]
    %v66 = vld [vmem:[#allocation6 + $0xa8] sm:$0xff]
    %v67 = vld [vmem:[#allocation6 + $0xb0] sm:$0xff]
    %v68 = vld [vmem:[#allocation6 + $0xb8] sm:$0xff]
    %v69 = vld [vmem:[#allocation6 + $0xc0] sm:$0xff]
    %v70 = vld [vmem:[#allocation6 + $0xc8] sm:$0xff]
    %v71 = vld [vmem:[#allocation6 + $0xd0] sm:$0xff]
    %v72 = vld [vmem:[#allocation6 + $0xd8] sm:$0xff]
    %v73 = vld [vmem:[#allocation6 + $0xe0] sm:$0xff]
    %v74 = vld [vmem:[#allocation6 + $0xe8] sm:$0xff]
    %v75 = vld [vmem:[#allocation6 + $0xf0] sm:$0xff]
    %v76 = vld [vmem:[#allocation6 + $0xf8] sm:$0xff]
    %77 = vmatprep.subr.mxu0 %v46
    %78 = vmatpush1.msra.mxu0 %v45
    %79 = vmatprep.subr.mxu0 %v48
    %80 = vmatpush1.msra.mxu0 %v47
    %81 = vmatprep.subr.mxu0 %v50
    %82 = vmatpush1.msra.mxu0 %v49
    %83 = vmatprep.subr.mxu0 %v52
    %84 = vmatpush1.msra.mxu0 %v51
    %85 = vmatprep.subr.mxu0 %v54
    %86 = vmatpush1.msra.mxu0 %v53
    %87 = vmatprep.subr.mxu0 %v56
    %88 = vmatpush1.msra.mxu0 %v55
    %89 = vmatprep.subr.mxu0 %v58
    %90 = vmatpush1.msra.mxu0 %v57
    %91 = vmatprep.subr.mxu0 %v60
    %92 = vmatpush1.msra.mxu0 %v59
    %93 = vmatprep.subr.mxu0 %v62
    %94 = vmatpush1.msra.mxu0 %v61
    %95 = vmatprep.subr.mxu0 %v64
    %96 = vmatpush1.msra.mxu0 %v63
    %97 = vmatprep.subr.mxu0 %v66
    %98 = vmatpush1.msra.mxu0 %v65
    %99 = vmatprep.subr.mxu0 %v68
    %100 = vmatpush1.msra.mxu0 %v67
    %101 = vmatprep.subr.mxu0 %v70
    %102 = vmatpush1.msra.mxu0 %v69
    %103 = vmatprep.subr.mxu0 %v72
    %104 = vmatpush1.msra.mxu0 %v71
    %105 = vmatprep.subr.mxu0 %v74
    %106 = vmatpush1.msra.mxu0 %v73
    %107 = vmatprep.subr.mxu0 %v76
    %108 = vmatpush1.msra.mxu0 %v75
    %109 = vmatprep.subr.mxu0 0.0
    %110 = vmatpush1.msra.mxu0 0.0
    %111 = vmatprep.subr.mxu0 0.0
    %112 = vmatpush1.msra.mxu0 0.0
    %113 = vmatprep.subr.mxu0 0.0
    %114 = vmatpush1.msra.mxu0 0.0
    %115 = vmatprep.subr.mxu0 0.0
    %116 = vmatpush1.msra.mxu0 0.0
    %117 = vmatprep.subr.mxu0 0.0
    %118 = vmatpush1.msra.mxu0 0.0
    %119 = vmatprep.subr.mxu0 0.0
    %120 = vmatpush1.msra.mxu0 0.0
    %121 = vmatprep.subr.mxu0 0.0
    %122 = vmatpush1.msra.mxu0 0.0
    %123 = vmatprep.subr.mxu0 0.0
    %124 = vmatpush1.msra.mxu0 0.0
    %125 = vmatprep.subr.mxu0 0.0
    %126 = vmatpush1.msra.mxu0 0.0
    %127 = vmatprep.subr.mxu0 0.0
    %128 = vmatpush1.msra.mxu0 0.0
    %129 = vmatprep.subr.mxu0 0.0
    %130 = vmatpush1.msra.mxu0 0.0
    %131 = vmatprep.subr.mxu0 0.0
    %132 = vmatpush1.msra.mxu0 0.0
    %133 = vmatprep.subr.mxu0 0.0
    %134 = vmatpush1.msra.mxu0 0.0
    %135 = vmatprep.subr.mxu0 0.0
    %136 = vmatpush1.msra.mxu0 0.0
    %137 = vmatprep.subr.mxu0 0.0
    %138 = vmatpush1.msra.mxu0 0.0
    %139 = vmatprep.subr.mxu0 0.0
    %140 = vmatpush1.msra.mxu0 0.0
    %141 = vmatprep.mubr.f32.mxu0 0.0
    %142 = vmatmul.mubr.f32.gmra.mrb[0].mxu0 %v43
    %v143 = vpop.f32.mrb[0].mxu0
    %v144 = vadd.f32 0.0, %v143
    %v145 = vpop.f32.mrb[0].mxu0
    %v146 = vadd.f32 0.0, %v145
    %147 = vmatprep.mubr.f32.mxu0 0.0
    %148 = vmatmul.mubr.f32.gmra.mrb[0].mxu0 %v44
    %v149 = vpop.f32.mrb[0].mxu0
    %v150 = vadd.f32 0.0, %v149
    %v151 = vpop.f32.mrb[0].mxu0
    %v152 = vadd.f32 0.0, %v151
    %153 = vdwg.mxu0
    %p154 = scmp.eq.s32.totalorder 0, 0
    // Predicated region
    $region22: #{_swiglu_padded.1} parent=1 // pred_check
      %p155 = pneg %p154
    $region23: #{_swiglu_padded.1} parent=1 // pred_check_branch
      %157 = sbr.rel (%p155) target = $region25
    $region24: #{_swiglu_padded.1} parent=1 // pred_region
      %158 = vst [vmem:[#allocation2] sm:$0xff] %v144
      %159 = vst [vmem:[#allocation2 + $0x8] sm:$0xff] %v146
      %160 = vst [vmem:[#allocation2 + $0x10] sm:$0xff] %v150
      %161 = vst [vmem:[#allocation2 + $0x18] sm:$0xff] %v152
    $region25: #{_swiglu_padded.1} parent=1 // pred_fallthru
      _
    %p162 = scmp.gt.s32.totalorder 0, 0
    // Predicated region
    $region26: #{_swiglu_padded.1} parent=1 // pred_check
      %p163 = pneg %p162
    $region27: #{_swiglu_padded.1} parent=1 // pred_check_branch
      %165 = sbr.rel (%p163) target = $region29
    $region28: #{_swiglu_padded.1} parent=1 // pred_region
      %v166 = vld [vmem:[#allocation2] sm:$0xff]
      %v167 = vld [vmem:[#allocation2 + $0x8] sm:$0xff]
      %v168 = vld [vmem:[#allocation2 + $0x10] sm:$0xff]
      %v169 = vld [vmem:[#allocation2 + $0x18] sm:$0xff]
      %v170 = vadd.f32 %v166, %v144
      %v171 = vadd.f32 %v167, %v146
      %v172 = vadd.f32 %v168, %v150
      %v173 = vadd.f32 %v169, %v152
      %174 = vst [vmem:[#allocation2] sm:$0xff] %v170
      %175 = vst [vmem:[#allocation2 + $0x8] sm:$0xff] %v171
      %176 = vst [vmem:[#allocation2 + $0x10] sm:$0xff] %v172
      %177 = vst [vmem:[#allocation2 + $0x18] sm:$0xff] %v173
    $region29: #{_swiglu_padded.1} parent=1 // pred_fallthru
      _
    // Predicated region
    $region30: #{_swiglu_padded.1} parent=1 // pred_check
      %p178 = pneg %p154
    $region31: #{_swiglu_padded.1} parent=1 // pred_check_branch
      %180 = sbr.rel (%p178) target = $region33
    $region32: #{_swiglu_padded.1} parent=1 // pred_region
      %v181 = vld [vmem:[#allocation2] sm:$0xff]
      %v182 = vld [vmem:[#allocation2 + $0x8] sm:$0xff]
      %v183 = vld [vmem:[#allocation2 + $0x10] sm:$0xff]
      %v184 = vld [vmem:[#allocation2 + $0x18] sm:$0xff]
      %v185 = vld [vmem:[%s2] sm:$0x3]
      %v187 = vlaneseq
      %v188 = vshrl.u32 %v187, 7
      %v189 = vsub.s32 0, %v188
      %v190 = vrot.slane %v185, %v189
      %v191 = vlaneseq
      %v192 = vshrl.u32 %v191, 7
      %v193 = vsub.s32 1, %v192
      %v194 = vrot.slane %v185, %v193
      %v197 = vadd.f32 %v181, %v190
      %v198 = vadd.f32 %v182, %v194
      %v199 = vadd.f32 %v183, %v190
      %v200 = vadd.f32 %v184, %v194
      %v201 = vxor.u32 %v197, 2147483648
      %v202 = vxor.u32 %v199, 2147483648
      %v203 = vmul.f32 %v201, 1.442695
      %v204 = vpow.pop %v203
      %v205 = vmul.f32 %v202, 1.442695
      %v206 = vpow.pop %v205
      %v207 = vadd.f32 %v204, 1.0
      %v208 = vadd.f32 %v206, 1.0
      %v209 = vrcp.pop %v207
      %v210 = vmul.f32 1.0, %v209
      %v211 = vrcp.pop %v208
      %v212 = vmul.f32 1.0, %v211
      %v213 = vmul.f32 %v197, %v210
      %v214 = vmul.f32 %v199, %v212
      %v215 = vmul.f32 %v213, %v198
      %v216 = vmul.f32 %v214, %v200
      %217 = vst [vmem:[#allocation8] sm:$0xff] %v215
      %218 = vst [vmem:[#allocation8 + $0x8] sm:$0xff] %v216
    $region33: #{_swiglu_padded.1} parent=1 // pred_fallthru
      _
    // Predicated region
    $region34: #{_swiglu_padded.1} parent=1 // pred_check
      _
    $region35: #{_swiglu_padded.1} parent=1 // pred_check_branch
      %220 = sbr.rel (0) target = $region37
    $region36: #{_swiglu_padded.1} parent=1 // pred_region
      %s222 = ssub.s32 256, 256
      %223 = vsyncadd [#allocation5], %s222
      %s224 = sshll.u32 [#allocation8], 4
      %s225 = int_to_ptr.vmem [resolvable:$true] %s224
      %230 = dma.vmem_to_hbm [thread:$0]  %s225, 256, %s3, [#allocation5], 128, 128, 8
    $region37: #{_swiglu_padded.1} parent=1 // pred_fallthru
      _
    // Predicated region
    $region38: #{_swiglu_padded.1} parent=1 // pred_check
      _
    $region39: #{_swiglu_padded.1} parent=1 // pred_check_branch
      %232 = sbr.rel (0) target = $region41
    $region40: #{_swiglu_padded.1} parent=1 // pred_region
      %233 = dma.done [#allocation5], 256
    $region41: #{_swiglu_padded.1} parent=1 // pred_fallthru
      _
    %234 = vsyncpa [#allocation4], 1
    %235 = vsyncpa [#allocation7], 1
    %236 = vsyncpa [#allocation5], 1

</llo_original>
